<compile_context>
chip_gen: v7x
topology: tpu7x:2x2x1
jax: 0.10.0
libtpu: 0.0.40
codegen_flags: <defaults>
</compile_context>

<pallas_src>
import jax
import jax.numpy as jnp
from jax.experimental import pallas as pl
from jax.experimental.pallas import tpu as pltpu

# The PyTorch snippet references undefined globals `min_value`/`max_value`;
# fix them deterministically here.
MIN_VALUE = -0.5
MAX_VALUE = 0.5

IN_FEATURES = 3
OUT_FEATURES = 6
LANES = 128

# Dense path: (bb * r_tile) 128-px rows per grid step.
# 2048 rows -> (3+6) channels * 2048 * 128 * 4 B = 9 MiB live, ~18 MiB double-buffered.
MAX_BLOCK_ROWS = 2048
# Flat (hw % 128 != 0) path: channels ride on sublanes (3->8 / 6->8 VMEM padding),
# so cap the lane extent to keep double-buffered blocks around 16 MiB.
MAX_FLAT_LANES = 1024 * 128
# 32 MiB scoped VMEM: already the default on v6e/v7x, raised from 16 MiB on v5e so
# the 2048-row dense tiles fit double-buffered on every generation.
VMEM_LIMIT_BYTES = 32 * 1024 * 1024


def linear_clamp_kernel(w_ref, b_ref, x_ref, o_ref):
    """w_ref: (6, 3) SMEM, b_ref: (6,) SMEM.

    x_ref: (bb, 3, r_tile, 128) or (1, 3, l_tile) VMEM
    o_ref: (bb, 6, r_tile, 128) or (1, 6, l_tile) VMEM
    Pure VPU path: out[o] = clamp(sum_k w[o, k] * x[k] + b[o]).
    """
    x0 = x_ref[:, 0]
    x1 = x_ref[:, 1]
    x2 = x_ref[:, 2]
    for o in range(OUT_FEATURES):
        y = x0 * w_ref[o, 0] + x1 * w_ref[o, 1] + x2 * w_ref[o, 2] + b_ref[o]
        y = jnp.maximum(y, MIN_VALUE)   # torch.clamp_min
        y = jnp.minimum(y, MAX_VALUE)   # torch.clamp_max
        o_ref[:, o] = y


def linear_clamp(x_nchw, weight, bias):
    """x_nchw: (B, 3, H, W) f32; weight: (6, 3) torch layout; bias: (6,).

    Returns (B, 6, H, W) f32 == clamp(Linear(3, 6) over the channel dim).
    """
    B, C, H, W = x_nchw.shape
    assert C == IN_FEATURES
    hw = H * W

    m = B * hw
    cost = pl.CostEstimate(
        flops=2 * m * IN_FEATURES * OUT_FEATURES + 2 * m * OUT_FEATURES,
        transcendentals=0,
        bytes_accessed=4 * m * (IN_FEATURES + OUT_FEATURES),
    )
    smem = pltpu.MemorySpace.SMEM
    params = pltpu.CompilerParams(
        dimension_semantics=("parallel", "parallel"),
        vmem_limit_bytes=VMEM_LIMIT_BYTES,
    )

    if hw % LANES == 0:
        # Dense path: free reshape to (B, 3, R, 128); fully lane/sublane dense.
        R = hw // LANES
        x4 = x_nchw.reshape(B, IN_FEATURES, R, LANES)
        if B * R <= MAX_BLOCK_ROWS:
            bb, r_tile = B, R                       # fold whole batch into one block
        else:
            bb = 1
            r_tile = R if R <= MAX_BLOCK_ROWS else MAX_BLOCK_ROWS
        grid = (pl.cdiv(B, bb), pl.cdiv(R, r_tile))
        out4 = pl.pallas_call(
            linear_clamp_kernel,
            out_shape=jax.ShapeDtypeStruct((B, OUT_FEATURES, R, LANES), jnp.float32),
            grid=grid,
            in_specs=[
                pl.BlockSpec(memory_space=smem),                       # weight (6, 3)
                pl.BlockSpec(memory_space=smem),                       # bias   (6,)
                pl.BlockSpec((bb, IN_FEATURES, r_tile, LANES),
                             lambda b, l: (b, 0, l, 0)),
            ],
            out_specs=pl.BlockSpec((bb, OUT_FEATURES, r_tile, LANES),
                                   lambda b, l: (b, 0, l, 0)),
            compiler_params=params,
            cost_estimate=cost,
        )(weight, bias, x4)
        return out4.reshape(B, OUT_FEATURES, H, W)

    # Ragged path: keep the spatial axis flat and let Pallas mask the ragged lane
    # tail on read and write -> no extra pad/slice HBM passes outside the kernel.
    x3 = x_nchw.reshape(B, IN_FEATURES, hw)
    l_tile = hw if hw <= MAX_FLAT_LANES else MAX_FLAT_LANES
    grid = (B, pl.cdiv(hw, l_tile))
    out3 = pl.pallas_call(
        linear_clamp_kernel,
        out_shape=jax.ShapeDtypeStruct((B, OUT_FEATURES, hw), jnp.float32),
        grid=grid,
        in_specs=[
            pl.BlockSpec(memory_space=smem),                           # weight (6, 3)
            pl.BlockSpec(memory_space=smem),                           # bias   (6,)
            pl.BlockSpec((1, IN_FEATURES, l_tile), lambda b, l: (b, 0, l)),
        ],
        out_specs=pl.BlockSpec((1, OUT_FEATURES, l_tile), lambda b, l: (b, 0, l)),
        compiler_params=params,
        cost_estimate=cost,
    )(weight, bias, x3)
    return out3.reshape(B, OUT_FEATURES, H, W)


def _reference(x, weight, bias):
    ref = jnp.einsum("bchw,oc->bohw", x, weight) + bias[None, :, None, None]
    return jnp.clip(ref, MIN_VALUE, MAX_VALUE)


if __name__ == "__main__":
    key = jax.random.PRNGKey(0)
    kx, kw, kb, kx2 = jax.random.split(key, 4)

    # Small NCHW shape consistent with the module (Linear(3, 6) over channels).
    B, H, W = 2, 16, 16
    x = jax.random.normal(kx, (B, IN_FEATURES, H, W), dtype=jnp.float32)

    # Deterministic parameter init (torch.nn.Linear-like uniform bound 1/sqrt(fan_in)).
    bound = 1.0 / (IN_FEATURES ** 0.5)
    weight = jax.random.uniform(kw, (OUT_FEATURES, IN_FEATURES),
                                minval=-bound, maxval=bound, dtype=jnp.float32)
    bias = jax.random.uniform(kb, (OUT_FEATURES,),
                              minval=-bound, maxval=bound, dtype=jnp.float32)

    # Dense (H*W % 128 == 0) path.
    out = jax.block_until_ready(linear_clamp(x, weight, bias))
    assert out.shape == (B, OUT_FEATURES, H, W)
    assert jnp.allclose(out, _reference(x, weight, bias), atol=1e-5, rtol=1e-5)

    # Ragged (H*W % 128 != 0) path — no pad/slice passes, masked lane tail.
    x2 = jax.random.normal(kx2, (1, IN_FEATURES, 20, 20), dtype=jnp.float32)
    out2 = jax.block_until_ready(linear_clamp(x2, weight, bias))
    assert out2.shape == (1, OUT_FEATURES, 20, 20)
    assert jnp.allclose(out2, _reference(x2, weight, bias), atol=1e-5, rtol=1e-5)

    print("KERNEL_OK")
</pallas_src>

<mosaic_0001>
module attributes {stable_mosaic.version = 11 : i64} {
  func.func @linear_clamp_kernel(%arg0: i32, %arg1: i32, %arg2: memref<6x3xf32, #tpu.memory_space<smem>>, %arg3: memref<6xf32, #tpu.memory_space<smem>>, %arg4: memref<2x3x2x128xf32, #tpu.memory_space<vmem>>, %arg5: memref<2x6x2x128xf32, #tpu.memory_space<vmem>>) attributes {dimension_semantics = [#tpu.dimension_semantics<parallel>, #tpu.dimension_semantics<parallel>], iteration_bounds = array<i64: 1, 1>, scalar_prefetch = 0 : i64, scratch_operands = 0 : i64, tpu.core_type = #tpu.core_type<tc>, window_params = [{transform_indices = @transform_0, window_bounds = array<i64: 6, 3>}, {transform_indices = @transform_1, window_bounds = array<i64: 6>}, {transform_indices = @transform_2, window_bounds = array<i64: 2, 3, 2, 128>}, {transform_indices = @transform_3, window_bounds = array<i64: 2, 6, 2, 128>}]} {
    %c0 = arith.constant 0 : index
    %c0_0 = arith.constant 0 : index
    %c0_1 = arith.constant 0 : index
    %c0_2 = arith.constant 0 : index
    %0 = vector.load %arg4[%c0, %c0_0, %c0_1, %c0_2] : memref<2x3x2x128xf32, #tpu.memory_space<vmem>>, vector<2x1x2x128xf32>
    %1 = vector.shape_cast %0 : vector<2x1x2x128xf32> to vector<2x2x128xf32>
    %c0_3 = arith.constant 0 : index
    %c1 = arith.constant 1 : index
    %c0_4 = arith.constant 0 : index
    %c0_5 = arith.constant 0 : index
    %2 = vector.load %arg4[%c0_3, %c1, %c0_4, %c0_5] : memref<2x3x2x128xf32, #tpu.memory_space<vmem>>, vector<2x1x2x128xf32>
    %3 = vector.shape_cast %2 : vector<2x1x2x128xf32> to vector<2x2x128xf32>
    %c0_6 = arith.constant 0 : index
    %c2 = arith.constant 2 : index
    %c0_7 = arith.constant 0 : index
    %c0_8 = arith.constant 0 : index
    %4 = vector.load %arg4[%c0_6, %c2, %c0_7, %c0_8] : memref<2x3x2x128xf32, #tpu.memory_space<vmem>>, vector<2x1x2x128xf32>
    %5 = vector.shape_cast %4 : vector<2x1x2x128xf32> to vector<2x2x128xf32>
    %c0_9 = arith.constant 0 : index
    %c0_10 = arith.constant 0 : index
    %6 = memref.load %arg2[%c0_9, %c0_10] : memref<6x3xf32, #tpu.memory_space<smem>>
    %7 = vector.broadcast %6 : f32 to vector<2x2x128xf32>
    %8 = arith.mulf %1, %7 : vector<2x2x128xf32>
    %c0_11 = arith.constant 0 : index
    %c1_12 = arith.constant 1 : index
    %9 = memref.load %arg2[%c0_11, %c1_12] : memref<6x3xf32, #tpu.memory_space<smem>>
    %10 = vector.broadcast %9 : f32 to vector<2x2x128xf32>
    %11 = arith.mulf %3, %10 : vector<2x2x128xf32>
    %12 = arith.addf %8, %11 : vector<2x2x128xf32>
    %c0_13 = arith.constant 0 : index
    %c2_14 = arith.constant 2 : index
    %13 = memref.load %arg2[%c0_13, %c2_14] : memref<6x3xf32, #tpu.memory_space<smem>>
    %14 = vector.broadcast %13 : f32 to vector<2x2x128xf32>
    %15 = arith.mulf %5, %14 : vector<2x2x128xf32>
    %16 = arith.addf %12, %15 : vector<2x2x128xf32>
    %c0_15 = arith.constant 0 : index
    %17 = memref.load %arg3[%c0_15] : memref<6xf32, #tpu.memory_space<smem>>
    %18 = vector.broadcast %17 : f32 to vector<2x2x128xf32>
    %19 = arith.addf %16, %18 : vector<2x2x128xf32>
    %cst = arith.constant -5.000000e-01 : f32
    %20 = vector.broadcast %cst : f32 to vector<2x2x128xf32>
    %21 = arith.maximumf %19, %20 : vector<2x2x128xf32>
    %cst_16 = arith.constant 5.000000e-01 : f32
    %22 = vector.broadcast %cst_16 : f32 to vector<2x2x128xf32>
    %23 = arith.minimumf %21, %22 : vector<2x2x128xf32>
    %c0_17 = arith.constant 0 : index
    %c0_18 = arith.constant 0 : index
    %c0_19 = arith.constant 0 : index
    %c0_20 = arith.constant 0 : index
    %24 = vector.load %arg5[%c0_17, %c0_18, %c0_19, %c0_20] : memref<2x6x2x128xf32, #tpu.memory_space<vmem>>, vector<2x1x2x128xf32>
    %25 = vector.shape_cast %24 : vector<2x1x2x128xf32> to vector<2x2x128xf32>
    %26 = vector.shape_cast %23 : vector<2x2x128xf32> to vector<2x1x2x128xf32>
    tpu.vector_store %arg5[%c0_17, %c0_18, %c0_19, %c0_20], %26 {strides = array<i32>} : memref<2x6x2x128xf32, #tpu.memory_space<vmem>>, vector<2x1x2x128xf32>,
    %c1_21 = arith.constant 1 : index
    %c0_22 = arith.constant 0 : index
    %27 = memref.load %arg2[%c1_21, %c0_22] : memref<6x3xf32, #tpu.memory_space<smem>>
    %28 = vector.broadcast %27 : f32 to vector<2x2x128xf32>
    %29 = arith.mulf %1, %28 : vector<2x2x128xf32>
    %c1_23 = arith.constant 1 : index
    %c1_24 = arith.constant 1 : index
    %30 = memref.load %arg2[%c1_23, %c1_24] : memref<6x3xf32, #tpu.memory_space<smem>>
    %31 = vector.broadcast %30 : f32 to vector<2x2x128xf32>
    %32 = arith.mulf %3, %31 : vector<2x2x128xf32>
    %33 = arith.addf %29, %32 : vector<2x2x128xf32>
    %c1_25 = arith.constant 1 : index
    %c2_26 = arith.constant 2 : index
    %34 = memref.load %arg2[%c1_25, %c2_26] : memref<6x3xf32, #tpu.memory_space<smem>>
    %35 = vector.broadcast %34 : f32 to vector<2x2x128xf32>
    %36 = arith.mulf %5, %35 : vector<2x2x128xf32>
    %37 = arith.addf %33, %36 : vector<2x2x128xf32>
    %c1_27 = arith.constant 1 : index
    %38 = memref.load %arg3[%c1_27] : memref<6xf32, #tpu.memory_space<smem>>
    %39 = vector.broadcast %38 : f32 to vector<2x2x128xf32>
    %40 = arith.addf %37, %39 : vector<2x2x128xf32>
    %cst_28 = arith.constant -5.000000e-01 : f32
    %41 = vector.broadcast %cst_28 : f32 to vector<2x2x128xf32>
    %42 = arith.maximumf %40, %41 : vector<2x2x128xf32>
    %cst_29 = arith.constant 5.000000e-01 : f32
    %43 = vector.broadcast %cst_29 : f32 to vector<2x2x128xf32>
    %44 = arith.minimumf %42, %43 : vector<2x2x128xf32>
    %c0_30 = arith.constant 0 : index
    %c1_31 = arith.constant 1 : index
    %c0_32 = arith.constant 0 : index
    %c0_33 = arith.constant 0 : index
    %45 = vector.load %arg5[%c0_30, %c1_31, %c0_32, %c0_33] : memref<2x6x2x128xf32, #tpu.memory_space<vmem>>, vector<2x1x2x128xf32>
    %46 = vector.shape_cast %45 : vector<2x1x2x128xf32> to vector<2x2x128xf32>
    %47 = vector.shape_cast %44 : vector<2x2x128xf32> to vector<2x1x2x128xf32>
    tpu.vector_store %arg5[%c0_30, %c1_31, %c0_32, %c0_33], %47 {strides = array<i32>} : memref<2x6x2x128xf32, #tpu.memory_space<vmem>>, vector<2x1x2x128xf32>,
    %c2_34 = arith.constant 2 : index
    %c0_35 = arith.constant 0 : index
    %48 = memref.load %arg2[%c2_34, %c0_35] : memref<6x3xf32, #tpu.memory_space<smem>>
    %49 = vector.broadcast %48 : f32 to vector<2x2x128xf32>
    %50 = arith.mulf %1, %49 : vector<2x2x128xf32>
    %c2_36 = arith.constant 2 : index
    %c1_37 = arith.constant 1 : index
    %51 = memref.load %arg2[%c2_36, %c1_37] : memref<6x3xf32, #tpu.memory_space<smem>>
    %52 = vector.broadcast %51 : f32 to vector<2x2x128xf32>
    %53 = arith.mulf %3, %52 : vector<2x2x128xf32>
    %54 = arith.addf %50, %53 : vector<2x2x128xf32>
    %c2_38 = arith.constant 2 : index
    %c2_39 = arith.constant 2 : index
    %55 = memref.load %arg2[%c2_38, %c2_39] : memref<6x3xf32, #tpu.memory_space<smem>>
    %56 = vector.broadcast %55 : f32 to vector<2x2x128xf32>
    %57 = arith.mulf %5, %56 : vector<2x2x128xf32>
    %58 = arith.addf %54, %57 : vector<2x2x128xf32>
    %c2_40 = arith.constant 2 : index
    %59 = memref.load %arg3[%c2_40] : memref<6xf32, #tpu.memory_space<smem>>
    %60 = vector.broadcast %59 : f32 to vector<2x2x128xf32>
    %61 = arith.addf %58, %60 : vector<2x2x128xf32>
    %cst_41 = arith.constant -5.000000e-01 : f32
    %62 = vector.broadcast %cst_41 : f32 to vector<2x2x128xf32>
    %63 = arith.maximumf %61, %62 : vector<2x2x128xf32>
    %cst_42 = arith.constant 5.000000e-01 : f32
    %64 = vector.broadcast %cst_42 : f32 to vector<2x2x128xf32>
    %65 = arith.minimumf %63, %64 : vector<2x2x128xf32>
    %c0_43 = arith.constant 0 : index
    %c2_44 = arith.constant 2 : index
    %c0_45 = arith.constant 0 : index
    %c0_46 = arith.constant 0 : index
    %66 = vector.load %arg5[%c0_43, %c2_44, %c0_45, %c0_46] : memref<2x6x2x128xf32, #tpu.memory_space<vmem>>, vector<2x1x2x128xf32>
    %67 = vector.shape_cast %66 : vector<2x1x2x128xf32> to vector<2x2x128xf32>
    %68 = vector.shape_cast %65 : vector<2x2x128xf32> to vector<2x1x2x128xf32>
    tpu.vector_store %arg5[%c0_43, %c2_44, %c0_45, %c0_46], %68 {strides = array<i32>} : memref<2x6x2x128xf32, #tpu.memory_space<vmem>>, vector<2x1x2x128xf32>,
    %c3 = arith.constant 3 : index
    %c0_47 = arith.constant 0 : index
    %69 = memref.load %arg2[%c3, %c0_47] : memref<6x3xf32, #tpu.memory_space<smem>>
    %70 = vector.broadcast %69 : f32 to vector<2x2x128xf32>
    %71 = arith.mulf %1, %70 : vector<2x2x128xf32>
    %c3_48 = arith.constant 3 : index
    %c1_49 = arith.constant 1 : index
    %72 = memref.load %arg2[%c3_48, %c1_49] : memref<6x3xf32, #tpu.memory_space<smem>>
    %73 = vector.broadcast %72 : f32 to vector<2x2x128xf32>
    %74 = arith.mulf %3, %73 : vector<2x2x128xf32>
    %75 = arith.addf %71, %74 : vector<2x2x128xf32>
    %c3_50 = arith.constant 3 : index
    %c2_51 = arith.constant 2 : index
    %76 = memref.load %arg2[%c3_50, %c2_51] : memref<6x3xf32, #tpu.memory_space<smem>>
    %77 = vector.broadcast %76 : f32 to vector<2x2x128xf32>
    %78 = arith.mulf %5, %77 : vector<2x2x128xf32>
    %79 = arith.addf %75, %78 : vector<2x2x128xf32>
    %c3_52 = arith.constant 3 : index
    %80 = memref.load %arg3[%c3_52] : memref<6xf32, #tpu.memory_space<smem>>
    %81 = vector.broadcast %80 : f32 to vector<2x2x128xf32>
    %82 = arith.addf %79, %81 : vector<2x2x128xf32>
    %cst_53 = arith.constant -5.000000e-01 : f32
    %83 = vector.broadcast %cst_53 : f32 to vector<2x2x128xf32>
    %84 = arith.maximumf %82, %83 : vector<2x2x128xf32>
    %cst_54 = arith.constant 5.000000e-01 : f32
    %85 = vector.broadcast %cst_54 : f32 to vector<2x2x128xf32>
    %86 = arith.minimumf %84, %85 : vector<2x2x128xf32>
    %c0_55 = arith.constant 0 : index
    %c3_56 = arith.constant 3 : index
    %c0_57 = arith.constant 0 : index
    %c0_58 = arith.constant 0 : index
    %87 = vector.load %arg5[%c0_55, %c3_56, %c0_57, %c0_58] : memref<2x6x2x128xf32, #tpu.memory_space<vmem>>, vector<2x1x2x128xf32>
    %88 = vector.shape_cast %87 : vector<2x1x2x128xf32> to vector<2x2x128xf32>
    %89 = vector.shape_cast %86 : vector<2x2x128xf32> to vector<2x1x2x128xf32>
    tpu.vector_store %arg5[%c0_55, %c3_56, %c0_57, %c0_58], %89 {strides = array<i32>} : memref<2x6x2x128xf32, #tpu.memory_space<vmem>>, vector<2x1x2x128xf32>,
    %c4 = arith.constant 4 : index
    %c0_59 = arith.constant 0 : index
    %90 = memref.load %arg2[%c4, %c0_59] : memref<6x3xf32, #tpu.memory_space<smem>>
    %91 = vector.broadcast %90 : f32 to vector<2x2x128xf32>
    %92 = arith.mulf %1, %91 : vector<2x2x128xf32>
    %c4_60 = arith.constant 4 : index
    %c1_61 = arith.constant 1 : index
    %93 = memref.load %arg2[%c4_60, %c1_61] : memref<6x3xf32, #tpu.memory_space<smem>>
    %94 = vector.broadcast %93 : f32 to vector<2x2x128xf32>
    %95 = arith.mulf %3, %94 : vector<2x2x128xf32>
    %96 = arith.addf %92, %95 : vector<2x2x128xf32>
    %c4_62 = arith.constant 4 : index
    %c2_63 = arith.constant 2 : index
    %97 = memref.load %arg2[%c4_62, %c2_63] : memref<6x3xf32, #tpu.memory_space<smem>>
    %98 = vector.broadcast %97 : f32 to vector<2x2x128xf32>
    %99 = arith.mulf %5, %98 : vector<2x2x128xf32>
    %100 = arith.addf %96, %99 : vector<2x2x128xf32>
    %c4_64 = arith.constant 4 : index
    %101 = memref.load %arg3[%c4_64] : memref<6xf32, #tpu.memory_space<smem>>
    %102 = vector.broadcast %101 : f32 to vector<2x2x128xf32>
    %103 = arith.addf %100, %102 : vector<2x2x128xf32>
    %cst_65 = arith.constant -5.000000e-01 : f32
    %104 = vector.broadcast %cst_65 : f32 to vector<2x2x128xf32>
    %105 = arith.maximumf %103, %104 : vector<2x2x128xf32>
    %cst_66 = arith.constant 5.000000e-01 : f32
    %106 = vector.broadcast %cst_66 : f32 to vector<2x2x128xf32>
    %107 = arith.minimumf %105, %106 : vector<2x2x128xf32>
    %c0_67 = arith.constant 0 : index
    %c4_68 = arith.constant 4 : index
    %c0_69 = arith.constant 0 : index
    %c0_70 = arith.constant 0 : index
    %108 = vector.load %arg5[%c0_67, %c4_68, %c0_69, %c0_70] : memref<2x6x2x128xf32, #tpu.memory_space<vmem>>, vector<2x1x2x128xf32>
    %109 = vector.shape_cast %108 : vector<2x1x2x128xf32> to vector<2x2x128xf32>
    %110 = vector.shape_cast %107 : vector<2x2x128xf32> to vector<2x1x2x128xf32>
    tpu.vector_store %arg5[%c0_67, %c4_68, %c0_69, %c0_70], %110 {strides = array<i32>} : memref<2x6x2x128xf32, #tpu.memory_space<vmem>>, vector<2x1x2x128xf32>,
    %c5 = arith.constant 5 : index
    %c0_71 = arith.constant 0 : index
    %111 = memref.load %arg2[%c5, %c0_71] : memref<6x3xf32, #tpu.memory_space<smem>>
    %112 = vector.broadcast %111 : f32 to vector<2x2x128xf32>
    %113 = arith.mulf %1, %112 : vector<2x2x128xf32>
    %c5_72 = arith.constant 5 : index
    %c1_73 = arith.constant 1 : index
    %114 = memref.load %arg2[%c5_72, %c1_73] : memref<6x3xf32, #tpu.memory_space<smem>>
    %115 = vector.broadcast %114 : f32 to vector<2x2x128xf32>
    %116 = arith.mulf %3, %115 : vector<2x2x128xf32>
    %117 = arith.addf %113, %116 : vector<2x2x128xf32>
    %c5_74 = arith.constant 5 : index
    %c2_75 = arith.constant 2 : index
    %118 = memref.load %arg2[%c5_74, %c2_75] : memref<6x3xf32, #tpu.memory_space<smem>>
    %119 = vector.broadcast %118 : f32 to vector<2x2x128xf32>
    %120 = arith.mulf %5, %119 : vector<2x2x128xf32>
    %121 = arith.addf %117, %120 : vector<2x2x128xf32>
    %c5_76 = arith.constant 5 : index
    %122 = memref.load %arg3[%c5_76] : memref<6xf32, #tpu.memory_space<smem>>
    %123 = vector.broadcast %122 : f32 to vector<2x2x128xf32>
    %124 = arith.addf %121, %123 : vector<2x2x128xf32>
    %cst_77 = arith.constant -5.000000e-01 : f32
    %125 = vector.broadcast %cst_77 : f32 to vector<2x2x128xf32>
    %126 = arith.maximumf %124, %125 : vector<2x2x128xf32>
    %cst_78 = arith.constant 5.000000e-01 : f32
    %127 = vector.broadcast %cst_78 : f32 to vector<2x2x128xf32>
    %128 = arith.minimumf %126, %127 : vector<2x2x128xf32>
    %c0_79 = arith.constant 0 : index
    %c5_80 = arith.constant 5 : index
    %c0_81 = arith.constant 0 : index
    %c0_82 = arith.constant 0 : index
    %129 = vector.load %arg5[%c0_79, %c5_80, %c0_81, %c0_82] : memref<2x6x2x128xf32, #tpu.memory_space<vmem>>, vector<2x1x2x128xf32>
    %130 = vector.shape_cast %129 : vector<2x1x2x128xf32> to vector<2x2x128xf32>
    %131 = vector.shape_cast %128 : vector<2x2x128xf32> to vector<2x1x2x128xf32>
    tpu.vector_store %arg5[%c0_79, %c5_80, %c0_81, %c0_82], %131 {strides = array<i32>} : memref<2x6x2x128xf32, #tpu.memory_space<vmem>>, vector<2x1x2x128xf32>,
    return
  }
  func.func @transform_0(%arg0: i32, %arg1: i32) -> (i32, i32) {
    %c0_i32 = arith.constant 0 : i32
    %c0_i32_0 = arith.constant 0 : i32
    %c0_i32_1 = arith.constant 0 : i32
    return %c0_i32, %c0_i32_0 : i32, i32
  }
  func.func @transform_1(%arg0: i32, %arg1: i32) -> i32 {
    %c0_i32 = arith.constant 0 : i32
    %c0_i32_0 = arith.constant 0 : i32
    return %c0_i32 : i32
  }
  func.func @transform_2(%arg0: i32, %arg1: i32) -> (i32, i32, i32, i32) {
    %c0_i32 = arith.constant 0 : i32
    %c0_i32_0 = arith.constant 0 : i32
    %c0_i32_1 = arith.constant 0 : i32
    return %arg0, %c0_i32, %arg1, %c0_i32_0 : i32, i32, i32, i32
  }
  func.func @transform_3(%arg0: i32, %arg1: i32) -> (i32, i32, i32, i32) {
    %c0_i32 = arith.constant 0 : i32
    %c0_i32_0 = arith.constant 0 : i32
    %c0_i32_1 = arith.constant 0 : i32
    return %arg0, %c0_i32, %arg1, %c0_i32_0 : i32, i32, i32, i32
  }
}

</mosaic_0001>

<llo_original>
// kernel: tpu_custom_call.1
$region0: #{tpu_custom_call.1}
  #allocation0 [shape = 'u32[]', space=smem, size = 0x4, offset = 0x4, fixed_abs, tag = 'smem constant byte address 0x4 - core index']
  #allocation1 [shape = 'u32[144,128]{1,0:T(1,128)}', space=vmem, size = 0x12000, scoped, tag = 'internal scratch']
  %s0 = inlined_call_operand.vmem [shape: f32[6,3], index: 0, kind: input, shape index: {}]
  %s1 = inlined_call_operand.vmem [shape: f32[6], index: 1, kind: input, shape index: {}]
  %s2 = inlined_call_operand.vmem [shape: f32[2,3,2,128], index: 2, kind: input, shape index: {}]
  %s3 = inlined_call_operand.hbm [shape: f32[2,6,2,128], index: 3, kind: output, shape index: {}]
  %s4 = sld [smem:[#allocation0]]
  $region30: #{tpu_custom_call.1} parent=0
    _
  %s6 = ssub.s32 1, %s4
  %s7 = scalar_select 0, %s6, %s4
  $region1: #{tpu_custom_call.1} parent=0
    #allocation2 [shape = 'u8[4096]{0}', space=smem, size = 0x1000, scoped, tag = 'input window, operand 0, single buffered']
    #allocation3 [shape = 's32[1]{0}', space=sflag, size = 0x4, scoped, tag = 'scoped memory for tpu_custom_call.1']
    #allocation4 [shape = 's32[1]{0}', space=sflag, size = 0x4, scoped, tag = 'scoped memory for tpu_custom_call.1']
    #allocation5 [shape = 'u8[512]{0}', space=smem, size = 0x200, scoped, tag = 'input window, operand 1, single buffered']
    #allocation6 [shape = 's32[1]{0}', space=sflag, size = 0x4, scoped, tag = 'scoped memory for tpu_custom_call.1']
    #allocation7 [shape = 'u8[12288]{0}', space=vmem, size = 0x3000, scoped, tag = 'output window, operand 0, single buffered']
    %8 = vsyncpa [#allocation4], 0
    %9 = vsyncpa [#allocation6], 0
    %10 = vsyncpa [#allocation3], 0
    // Predicated region
    $region2: #{tpu_custom_call.1} parent=1 // pred_check
      _
    $region3: #{tpu_custom_call.1} parent=1 // pred_check_branch
      %12 = sbr.rel (0) target = $region5
    $region4: #{tpu_custom_call.1} parent=1 // pred_region
      %s14 = ssub.s32 128, 128
      %15 = vsyncadd [#allocation4], %s14
      %s17 = sshll.u32 %s0, 4
      %s18 = int_to_ptr.vmem [resolvable:$true] %s17
      %20 = dma.vmem_to_smem %s18, 128, [#allocation2], [#allocation4]
    $region5: #{tpu_custom_call.1} parent=1 // pred_fallthru
      _
    // Predicated region
    $region6: #{tpu_custom_call.1} parent=1 // pred_check
      _
    $region7: #{tpu_custom_call.1} parent=1 // pred_check_branch
      %22 = sbr.rel (0) target = $region9
    $region8: #{tpu_custom_call.1} parent=1 // pred_region
      %s24 = ssub.s32 16, 16
      %25 = vsyncadd [#allocation6], %s24
      %s27 = sshll.u32 %s1, 4
      %s28 = int_to_ptr.vmem [resolvable:$true] %s27
      %30 = dma.vmem_to_smem %s28, 16, [#allocation5], [#allocation6]
    $region9: #{tpu_custom_call.1} parent=1 // pred_fallthru
      _
    // Predicated region
    $region10: #{tpu_custom_call.1} parent=1 // pred_check
      _
    $region11: #{tpu_custom_call.1} parent=1 // pred_check_branch
      %32 = sbr.rel (0) target = $region13
    $region12: #{tpu_custom_call.1} parent=1 // pred_region
      _
    $region13: #{tpu_custom_call.1} parent=1 // pred_fallthru
      _
    // Predicated region
    $region14: #{tpu_custom_call.1} parent=1 // pred_check
      _
    $region15: #{tpu_custom_call.1} parent=1 // pred_check_branch
      %34 = sbr.rel (0) target = $region17
    $region16: #{tpu_custom_call.1} parent=1 // pred_region
      %35 = dma.done [#allocation4], 128
    $region17: #{tpu_custom_call.1} parent=1 // pred_fallthru
      _
    // Predicated region
    $region18: #{tpu_custom_call.1} parent=1 // pred_check
      _
    $region19: #{tpu_custom_call.1} parent=1 // pred_check_branch
      %37 = sbr.rel (0) target = $region21
    $region20: #{tpu_custom_call.1} parent=1 // pred_region
      %38 = dma.done [#allocation6], 16
    $region21: #{tpu_custom_call.1} parent=1 // pred_fallthru
      _
    %39 = sfence
    %v40 = vld [vmem:[%s2] sm:$0x3]
    %v41 = vld [vmem:[%s2 + $0x6] sm:$0x3]
    %s42 = scalar_lea.vmem %s2, 2
    %v43 = vld [vmem:[%s42] sm:$0x3]
    %v44 = vld [vmem:[%s42 + $0x6] sm:$0x3]
    %s45 = scalar_lea.vmem %s2, 4
    %v46 = vld [vmem:[%s45] sm:$0x3]
    %v47 = vld [vmem:[%s45 + $0x6] sm:$0x3]
    %s48 = sld [smem:[#allocation2]]
    %v49 = vstv %s48
    %v50 = vmul.f32 %v40, %v49
    %v51 = vmul.f32 %v41, %v49
    %s52 = sld [smem:[#allocation2 + $0x1]]
    %v53 = vstv %s52
    %v54 = vmul.f32 %v43, %v53
    %v55 = vmul.f32 %v44, %v53
    %v56 = vadd.f32 %v50, %v54
    %v57 = vadd.f32 %v51, %v55
    %s58 = sld [smem:[#allocation2 + $0x2]]
    %v59 = vstv %s58
    %v60 = vmul.f32 %v46, %v59
    %v61 = vmul.f32 %v47, %v59
    %v62 = vadd.f32 %v56, %v60
    %v63 = vadd.f32 %v57, %v61
    %s64 = sld [smem:[#allocation5]]
    %v65 = vstv %s64
    %v66 = vadd.f32 %v62, %v65
    %v67 = vadd.f32 %v63, %v65
    %v68 = vmax.f32 %v66, -0.5
    %v69 = vmax.f32 %v67, -0.5
    %v70 = vmin.f32 %v68, 0.5
    %v71 = vmin.f32 %v69, 0.5
    %72 = vst [vmem:[#allocation7] sm:$0x3] %v70
    %73 = vst [vmem:[#allocation7 + $0xc] sm:$0x3] %v71
    %s74 = sld [smem:[#allocation2 + $0x80]]
    %v75 = vstv %s74
    %v76 = vmul.f32 %v40, %v75
    %v77 = vmul.f32 %v41, %v75
    %s78 = sld [smem:[#allocation2 + $0x81]]
    %v79 = vstv %s78
    %v80 = vmul.f32 %v43, %v79
    %v81 = vmul.f32 %v44, %v79
    %v82 = vadd.f32 %v76, %v80
    %v83 = vadd.f32 %v77, %v81
    %s84 = sld [smem:[#allocation2 + $0x82]]
    %v85 = vstv %s84
    %v86 = vmul.f32 %v46, %v85
    %v87 = vmul.f32 %v47, %v85
    %v88 = vadd.f32 %v82, %v86
    %v89 = vadd.f32 %v83, %v87
    %s90 = sld [smem:[#allocation5 + $0x1]]
    %v91 = vstv %s90
    %v92 = vadd.f32 %v88, %v91
    %v93 = vadd.f32 %v89, %v91
    %v94 = vmax.f32 %v92, -0.5
    %v95 = vmax.f32 %v93, -0.5
    %v96 = vmin.f32 %v94, 0.5
    %v97 = vmin.f32 %v95, 0.5
    %s98 = scalar_lea.vmem [#allocation7], 2
    %99 = vst [vmem:[%s98] sm:$0x3] %v96
    %100 = vst [vmem:[%s98 + $0xc] sm:$0x3] %v97
    %s101 = sld [smem:[#allocation2 + $0x100]]
    %v102 = vstv %s101
    %v103 = vmul.f32 %v40, %v102
    %v104 = vmul.f32 %v41, %v102
    %s105 = sld [smem:[#allocation2 + $0x101]]
    %v106 = vstv %s105
    %v107 = vmul.f32 %v43, %v106
    %v108 = vmul.f32 %v44, %v106
    %v109 = vadd.f32 %v103, %v107
    %v110 = vadd.f32 %v104, %v108
    %s111 = sld [smem:[#allocation2 + $0x102]]
    %v112 = vstv %s111
    %v113 = vmul.f32 %v46, %v112
    %v114 = vmul.f32 %v47, %v112
    %v115 = vadd.f32 %v109, %v113
    %v116 = vadd.f32 %v110, %v114
    %s117 = sld [smem:[#allocation5 + $0x2]]
    %v118 = vstv %s117
    %v119 = vadd.f32 %v115, %v118
    %v120 = vadd.f32 %v116, %v118
    %v121 = vmax.f32 %v119, -0.5
    %v122 = vmax.f32 %v120, -0.5
    %v123 = vmin.f32 %v121, 0.5
    %v124 = vmin.f32 %v122, 0.5
    %s125 = scalar_lea.vmem [#allocation7], 4
    %126 = vst [vmem:[%s125] sm:$0x3] %v123
    %127 = vst [vmem:[%s125 + $0xc] sm:$0x3] %v124
    %s128 = sld [smem:[#allocation2 + $0x180]]
    %v129 = vstv %s128
    %v130 = vmul.f32 %v40, %v129
    %v131 = vmul.f32 %v41, %v129
    %s132 = sld [smem:[#allocation2 + $0x181]]
    %v133 = vstv %s132
    %v134 = vmul.f32 %v43, %v133
    %v135 = vmul.f32 %v44, %v133
    %v136 = vadd.f32 %v130, %v134
    %v137 = vadd.f32 %v131, %v135
    %s138 = sld [smem:[#allocation2 + $0x182]]
    %v139 = vstv %s138
    %v140 = vmul.f32 %v46, %v139
    %v141 = vmul.f32 %v47, %v139
    %v142 = vadd.f32 %v136, %v140
    %v143 = vadd.f32 %v137, %v141
    %s144 = sld [smem:[#allocation5 + $0x3]]
    %v145 = vstv %s144
    %v146 = vadd.f32 %v142, %v145
    %v147 = vadd.f32 %v143, %v145
    %v148 = vmax.f32 %v146, -0.5
    %v149 = vmax.f32 %v147, -0.5
    %v150 = vmin.f32 %v148, 0.5
    %v151 = vmin.f32 %v149, 0.5
    %s152 = scalar_lea.vmem [#allocation7], 6
    %153 = vst [vmem:[%s152] sm:$0x3] %v150
    %154 = vst [vmem:[%s152 + $0xc] sm:$0x3] %v151
    %s155 = sld [smem:[#allocation2 + $0x200]]
    %v156 = vstv %s155
    %v157 = vmul.f32 %v40, %v156
    %v158 = vmul.f32 %v41, %v156
    %s159 = sld [smem:[#allocation2 + $0x201]]
    %v160 = vstv %s159
    %v161 = vmul.f32 %v43, %v160
    %v162 = vmul.f32 %v44, %v160
    %v163 = vadd.f32 %v157, %v161
    %v164 = vadd.f32 %v158, %v162
    %s165 = sld [smem:[#allocation2 + $0x202]]
    %v166 = vstv %s165
    %v167 = vmul.f32 %v46, %v166
    %v168 = vmul.f32 %v47, %v166
    %v169 = vadd.f32 %v163, %v167
    %v170 = vadd.f32 %v164, %v168
    %s171 = sld [smem:[#allocation5 + $0x4]]
    %v172 = vstv %s171
    %v173 = vadd.f32 %v169, %v172
    %v174 = vadd.f32 %v170, %v172
    %v175 = vmax.f32 %v173, -0.5
    %v176 = vmax.f32 %v174, -0.5
    %v177 = vmin.f32 %v175, 0.5
    %v178 = vmin.f32 %v176, 0.5
    %s179 = scalar_lea.vmem [#allocation7], 8
    %180 = vst [vmem:[%s179] sm:$0x3] %v177
    %181 = vst [vmem:[%s179 + $0xc] sm:$0x3] %v178
    %s182 = sld [smem:[#allocation2 + $0x280]]
    %v183 = vstv %s182
    %v184 = vmul.f32 %v40, %v183
    %v185 = vmul.f32 %v41, %v183
    %s186 = sld [smem:[#allocation2 + $0x281]]
    %v187 = vstv %s186
    %v188 = vmul.f32 %v43, %v187
    %v189 = vmul.f32 %v44, %v187
    %v190 = vadd.f32 %v184, %v188
    %v191 = vadd.f32 %v185, %v189
    %s192 = sld [smem:[#allocation2 + $0x282]]
    %v193 = vstv %s192
    %v194 = vmul.f32 %v46, %v193
    %v195 = vmul.f32 %v47, %v193
    %v196 = vadd.f32 %v190, %v194
    %v197 = vadd.f32 %v191, %v195
    %s198 = sld [smem:[#allocation5 + $0x5]]
    %v199 = vstv %s198
    %v200 = vadd.f32 %v196, %v199
    %v201 = vadd.f32 %v197, %v199
    %v202 = vmax.f32 %v200, -0.5
    %v203 = vmax.f32 %v201, -0.5
    %v204 = vmin.f32 %v202, 0.5
    %v205 = vmin.f32 %v203, 0.5
    %s206 = scalar_lea.vmem [#allocation7], 10
    %207 = vst [vmem:[%s206] sm:$0x3] %v204
    %208 = vst [vmem:[%s206 + $0xc] sm:$0x3] %v205
    // Predicated region
    $region22: #{tpu_custom_call.1} parent=1 // pred_check
      _
    $region23: #{tpu_custom_call.1} parent=1 // pred_check_branch
      %210 = sbr.rel (0) target = $region25
    $region24: #{tpu_custom_call.1} parent=1 // pred_region
      %s212 = ssub.s32 384, 384
      %213 = vsyncadd [#allocation3], %s212
      %s214 = sshll.u32 [#allocation7], 4
      %s215 = int_to_ptr.vmem [resolvable:$true] %s214
      %220 = dma.vmem_to_hbm [thread:$0]  %s215, 384, %s3, [#allocation3], 32, 32, 2
    $region25: #{tpu_custom_call.1} parent=1 // pred_fallthru
      _
    // Predicated region
    $region26: #{tpu_custom_call.1} parent=1 // pred_check
      _
    $region27: #{tpu_custom_call.1} parent=1 // pred_check_branch
      %222 = sbr.rel (0) target = $region29
    $region28: #{tpu_custom_call.1} parent=1 // pred_region
      %223 = dma.done [#allocation3], 384
    $region29: #{tpu_custom_call.1} parent=1 // pred_fallthru
      _
    %224 = vsyncpa [#allocation3], 1
    %225 = vsyncpa [#allocation4], 1
    %226 = vsyncpa [#allocation6], 1

</llo_original>
